<compile_context>
chip_gen: v7x
topology: tpu7x:2x2x1
jax: 0.10.0
libtpu: 0.0.40
codegen_flags: <defaults>
</compile_context>

<pallas_src>
import functools

import jax
import jax.numpy as jnp
from jax.experimental import pallas as pl
from jax.experimental.pallas import tpu as pltpu

_LANES = 128     # vreg lane width
_SUBLANES = 8    # f32 sublane granule (accumulator shape)


def _tpu_generation() -> str:
    """Best-effort TPU generation detection from the device kind string."""
    try:
        kind = jax.devices()[0].device_kind.lower()
    except Exception:  # pragma: no cover - defensive
        return "unknown"
    if "v7" in kind:
        return "v7x"
    if "v6" in kind:
        return "v6e"
    if "v5 lite" in kind or "v5lite" in kind or "v5e" in kind:
        return "v5e"
    return "other"


def _rmse_partial_kernel(yhat_ref, y_ref, o_ref, acc_ref, *,
                         total_rows, block_rows, tiles_per_split):
    """Accumulate sum((yhat-y)^2) per split into an (8,128) f32 accumulator."""
    s = pl.program_id(0)   # core-split axis ("parallel", v7x only uses 2)
    i = pl.program_id(1)   # reduction axis ("arbitrary")

    @pl.when(i == 0)
    def _():
        acc_ref[...] = jnp.zeros_like(acc_ref)

    d = yhat_ref[...].astype(jnp.float32) - y_ref[...].astype(jnp.float32)

    # Global (unclamped) row offset of this block.  Only the ragged last block
    # and duplicated/clamped split tiles need masking; gate the mask chain so
    # interior tiles are just sub + mul + add.
    row0 = (s * tiles_per_split + i) * block_rows
    needs_mask = row0 + block_rows > total_rows

    @pl.when(needs_mask)
    def _():
        row_ids = row0 + jax.lax.broadcasted_iota(
            jnp.int32, (block_rows, _LANES), 0)
        # Mask BEFORE squaring so garbage/stale data (possibly Inf/NaN after
        # the subtraction) is discarded bitwise.
        dm = jnp.where(row_ids < total_rows, d, jnp.float32(0.0))
        acc_ref[...] += jnp.sum(
            (dm * dm).reshape(-1, _SUBLANES, _LANES), axis=0)

    @pl.when(jnp.logical_not(needs_mask))
    def _():
        acc_ref[...] += jnp.sum(
            (d * d).reshape(-1, _SUBLANES, _LANES), axis=0)

    @pl.when(i == pl.num_programs(1) - 1)
    def _():
        # Emit the per-split (8,128) partial-sum tile; final reduction, mean
        # and sqrt are trivial scalar work done in the wrapper.
        o_ref[...] = acc_ref[...]


def rmse_loss(yhat: jax.Array, y: jax.Array, eps: float = 1e-6) -> jax.Array:
    """RMSE loss over all elements, computed with a Pallas TPU kernel."""
    assert yhat.shape == y.shape, "yhat and y must have the same shape"
    n_elems = yhat.size

    yhat_flat = yhat.reshape(-1)
    y_flat = y.reshape(-1)

    itemsize = int(yhat.dtype.itemsize)
    row_granule = max(_SUBLANES, 32 // itemsize)   # 8 f32 / 16 bf16 / 32 int8
    granule = row_granule * _LANES

    # Aligned prefix goes through the kernel; the <granule tail is summed with
    # plain jnp in the wrapper (no full-array pad copy).
    n_main = (n_elems // granule) * granule
    tail_sq_sum = jnp.float32(0.0)
    if n_main < n_elems:
        td = (yhat_flat[n_main:].astype(jnp.float32)
              - y_flat[n_main:].astype(jnp.float32))
        tail_sq_sum = jnp.sum(td * td)

    if n_main == 0:
        # Input smaller than one granule: pure-jnp fallback.
        mse = tail_sq_sum / jnp.float32(n_elems)
        return jnp.sqrt(mse + jnp.float32(eps))

    total_rows = n_main // _LANES
    yhat_2d = yhat_flat[:n_main].reshape(total_rows, _LANES)
    y_2d = y_flat[:n_main].reshape(total_rows, _LANES)

    gen = _tpu_generation()
    # ~4 MiB blocks on v6e/v7x (fits 2 inputs x 2 buffers = 16 MiB within the
    # 32 MiB default scoped VMEM); ~2 MiB on v5e/unknown (16 MiB default).
    max_block_bytes = (2 << 20) if gen in ("v5e", "unknown") else (4 << 20)
    max_block_rows = max(
        row_granule,
        (max_block_bytes // (_LANES * itemsize)) // row_granule * row_granule)
    block_rows = min(max_block_rows, total_rows)

    tiles_total = pl.cdiv(total_rows, block_rows)
    # The split only pays on v7x (2 TensorCores per chip).
    num_splits = 2 if (gen == "v7x" and tiles_total >= 2) else 1
    tiles_per_split = pl.cdiv(tiles_total, num_splits)

    def in_index_map(s, i):
        # Clamp so duplicated trailing tiles stay in bounds; their global row
        # offsets are >= total_rows so the in-kernel mask zeroes them.
        return (jnp.minimum(s * tiles_per_split + i, tiles_total - 1), 0)

    kernel = functools.partial(
        _rmse_partial_kernel,
        total_rows=total_rows,
        block_rows=block_rows,
        tiles_per_split=tiles_per_split,
    )

    cost = pl.CostEstimate(
        flops=3 * n_main,
        transcendentals=0,
        bytes_accessed=2 * n_main * itemsize
        + num_splits * _SUBLANES * _LANES * 4,
    )

    out = pl.pallas_call(
        kernel,
        out_shape=jax.ShapeDtypeStruct((num_splits * _SUBLANES, _LANES),
                                       jnp.float32),
        grid_spec=pltpu.PrefetchScalarGridSpec(
            num_scalar_prefetch=0,
            grid=(num_splits, tiles_per_split),
            in_specs=[
                pl.BlockSpec((block_rows, _LANES), in_index_map),
                pl.BlockSpec((block_rows, _LANES), in_index_map),
            ],
            out_specs=pl.BlockSpec((_SUBLANES, _LANES), lambda s, i: (s, 0)),
            scratch_shapes=[pltpu.VMEM((_SUBLANES, _LANES), jnp.float32)],
        ),
        compiler_params=pltpu.CompilerParams(
            dimension_semantics=("parallel", "arbitrary"),
        ),
        cost_estimate=cost,
    )(yhat_2d, y_2d)

    mse = (jnp.sum(out) + tail_sq_sum) / jnp.float32(n_elems)
    return jnp.sqrt(mse + jnp.float32(eps))


if __name__ == "__main__":
    key = jax.random.PRNGKey(0)
    k1, k2, k3, k4, k5, k6 = jax.random.split(key, 6)
    eps = 1e-6

    # Small NCHW-style inputs (the loss itself is shape-agnostic).
    x_shape = (2, 4, 16, 16)
    yhat = jax.random.normal(k1, x_shape, dtype=jnp.float32)
    y = jax.random.normal(k2, x_shape, dtype=jnp.float32)
    loss = rmse_loss(yhat, y, eps)
    jax.block_until_ready(loss)
    ref = jnp.sqrt(jnp.mean((yhat - y) ** 2) + eps)
    assert jnp.allclose(loss, ref, rtol=1e-5, atol=1e-6), (loss, ref)

    # Ragged size (numel not a multiple of the granule) exercises the
    # wrapper-side tail path + partial-block mask.
    t_shape = (3, 5, 7, 11)
    yhat_t = jax.random.normal(k3, t_shape, dtype=jnp.float32)
    y_t = jax.random.normal(k4, t_shape, dtype=jnp.float32)
    loss_t = rmse_loss(yhat_t, y_t, eps)
    jax.block_until_ready(loss_t)
    ref_t = jnp.sqrt(jnp.mean((yhat_t - y_t) ** 2) + eps)
    assert jnp.allclose(loss_t, ref_t, rtol=1e-5, atol=1e-6), (loss_t, ref_t)

    # bf16 path (16-row granule; diff computed in f32 inside the kernel).
    yhat_b = jax.random.normal(k5, x_shape, dtype=jnp.bfloat16)
    y_b = jax.random.normal(k6, x_shape, dtype=jnp.bfloat16)
    loss_b = rmse_loss(yhat_b, y_b, eps)
    jax.block_until_ready(loss_b)
    db = yhat_b.astype(jnp.float32) - y_b.astype(jnp.float32)
    ref_b = jnp.sqrt(jnp.mean(db * db) + eps)
    assert jnp.allclose(loss_b, ref_b, rtol=1e-4, atol=1e-5), (loss_b, ref_b)

    print("KERNEL_OK")
</pallas_src>

<mosaic_0001>
module attributes {stable_mosaic.version = 11 : i64} {
  func.func @_rmse_partial_kernel(%arg0: i32, %arg1: i32, %arg2: memref<16x128xf32, #tpu.memory_space<vmem>>, %arg3: memref<16x128xf32, #tpu.memory_space<vmem>>, %arg4: memref<8x128xf32, #tpu.memory_space<vmem>>, %arg5: memref<8x128xf32, #tpu.memory_space<vmem>>) attributes {dimension_semantics = [#tpu.dimension_semantics<parallel>, #tpu.dimension_semantics<arbitrary>], iteration_bounds = array<i64: 1, 1>, scalar_prefetch = 0 : i64, scratch_operands = 1 : i64, tpu.core_type = #tpu.core_type<tc>, window_params = [{transform_indices = @transform_0, window_bounds = array<i64: 16, 128>}, {transform_indices = @transform_1, window_bounds = array<i64: 16, 128>}, {transform_indices = @transform_2, window_bounds = array<i64: 8, 128>}]} {
    %c0_i32 = arith.constant 0 : i32
    %0 = arith.cmpi eq, %arg1, %c0_i32 : i32
    %1 = arith.extui %0 : i1 to i32
    %c0_i32_0 = arith.constant 0 : i32
    %2 = arith.cmpi ne, %1, %c0_i32_0 : i32
    scf.if %2 {
      %cst = arith.constant 0.000000e+00 : f32
      %19 = vector.broadcast %cst : f32 to vector<8x128xf32>
      %c0_10 = arith.constant 0 : index
      %c0_11 = arith.constant 0 : index
      %20 = vector.load %arg5[%c0_10, %c0_11] : memref<8x128xf32, #tpu.memory_space<vmem>>, vector<8x128xf32>
      tpu.vector_store %arg5[%c0_10, %c0_11], %19 {strides = array<i32>} : memref<8x128xf32, #tpu.memory_space<vmem>>, vector<8x128xf32>,
    } else {
    }
    %c0 = arith.constant 0 : index
    %c0_1 = arith.constant 0 : index
    %3 = vector.load %arg2[%c0, %c0_1] : memref<16x128xf32, #tpu.memory_space<vmem>>, vector<16x128xf32>
    %c0_2 = arith.constant 0 : index
    %c0_3 = arith.constant 0 : index
    %4 = vector.load %arg3[%c0_2, %c0_3] : memref<16x128xf32, #tpu.memory_space<vmem>>, vector<16x128xf32>
    %5 = arith.subf %3, %4 : vector<16x128xf32>
    %c1_i32 = arith.constant 1 : i32
    %6 = arith.muli %arg0, %c1_i32 : i32
    %7 = arith.addi %6, %arg1 : i32
    %c16_i32 = arith.constant 16 : i32
    %8 = arith.muli %7, %c16_i32 : i32
    %c16_i32_4 = arith.constant 16 : i32
    %9 = arith.addi %8, %c16_i32_4 : i32
    %c16_i32_5 = arith.constant 16 : i32
    %10 = arith.cmpi sgt, %9, %c16_i32_5 : i32
    %11 = arith.extui %10 : i1 to i32
    %c0_i32_6 = arith.constant 0 : i32
    %12 = arith.cmpi ne, %11, %c0_i32_6 : i32
    scf.if %12 {
      %19 = tpu.iota {dimensions = array<i32: 0>} : vector<16x128xi32>
      %20 = vector.broadcast %8 : i32 to vector<16x128xi32>
      %21 = arith.addi %20, %19 : vector<16x128xi32>
      %c16_i32_10 = arith.constant 16 : i32
      %22 = vector.broadcast %c16_i32_10 : i32 to vector<16x128xi32>
      %23 = arith.cmpi slt, %21, %22 : vector<16x128xi32>
      %cst = arith.constant 0.000000e+00 : f32
      %24 = vector.broadcast %cst : f32 to vector<16x128xf32>
      %25 = arith.select %23, %5, %24 : vector<16x128xi1>, vector<16x128xf32>
      %c0_11 = arith.constant 0 : index
      %c0_12 = arith.constant 0 : index
      %26 = vector.load %arg5[%c0_11, %c0_12] : memref<8x128xf32, #tpu.memory_space<vmem>>, vector<8x128xf32>
      %27 = arith.mulf %25, %25 : vector<16x128xf32>
      %28 = vector.shape_cast %27 : vector<16x128xf32> to vector<2x8x128xf32>
      %cst_13 = arith.constant dense<0.000000e+00> : vector<8x128xf32>
      %29 = vector.multi_reduction <add>, %28, %cst_13 [0] : vector<2x8x128xf32> to vector<8x128xf32>
      %30 = arith.addf %26, %29 : vector<8x128xf32>
      %c0_14 = arith.constant 0 : index
      %c0_15 = arith.constant 0 : index
      %31 = vector.load %arg5[%c0_14, %c0_15] : memref<8x128xf32, #tpu.memory_space<vmem>>, vector<8x128xf32>
      tpu.vector_store %arg5[%c0_14, %c0_15], %30 {strides = array<i32>} : memref<8x128xf32, #tpu.memory_space<vmem>>, vector<8x128xf32>,
    } else {
    }
    %true = arith.constant true
    %13 = arith.xori %10, %true : i1
    %14 = arith.extui %13 : i1 to i32
    %c0_i32_7 = arith.constant 0 : i32
    %15 = arith.cmpi ne, %14, %c0_i32_7 : i32
    scf.if %15 {
      %c0_10 = arith.constant 0 : index
      %c0_11 = arith.constant 0 : index
      %19 = vector.load %arg5[%c0_10, %c0_11] : memref<8x128xf32, #tpu.memory_space<vmem>>, vector<8x128xf32>
      %20 = arith.mulf %5, %5 : vector<16x128xf32>
      %21 = vector.shape_cast %20 : vector<16x128xf32> to vector<2x8x128xf32>
      %cst = arith.constant dense<0.000000e+00> : vector<8x128xf32>
      %22 = vector.multi_reduction <add>, %21, %cst [0] : vector<2x8x128xf32> to vector<8x128xf32>
      %23 = arith.addf %19, %22 : vector<8x128xf32>
      %c0_12 = arith.constant 0 : index
      %c0_13 = arith.constant 0 : index
      %24 = vector.load %arg5[%c0_12, %c0_13] : memref<8x128xf32, #tpu.memory_space<vmem>>, vector<8x128xf32>
      tpu.vector_store %arg5[%c0_12, %c0_13], %23 {strides = array<i32>} : memref<8x128xf32, #tpu.memory_space<vmem>>, vector<8x128xf32>,
    } else {
    }
    %c0_i32_8 = arith.constant 0 : i32
    %16 = arith.cmpi eq, %arg1, %c0_i32_8 : i32
    %17 = arith.extui %16 : i1 to i32
    %c0_i32_9 = arith.constant 0 : i32
    %18 = arith.cmpi ne, %17, %c0_i32_9 : i32
    scf.if %18 {
      %c0_10 = arith.constant 0 : index
      %c0_11 = arith.constant 0 : index
      %19 = vector.load %arg5[%c0_10, %c0_11] : memref<8x128xf32, #tpu.memory_space<vmem>>, vector<8x128xf32>
      %c0_12 = arith.constant 0 : index
      %c0_13 = arith.constant 0 : index
      %20 = vector.load %arg4[%c0_12, %c0_13] : memref<8x128xf32, #tpu.memory_space<vmem>>, vector<8x128xf32>
      tpu.vector_store %arg4[%c0_12, %c0_13], %19 {strides = array<i32>} : memref<8x128xf32, #tpu.memory_space<vmem>>, vector<8x128xf32>,
    } else {
    }
    return
  }
  func.func @transform_0(%arg0: i32, %arg1: i32) -> (i32, i32) {
    %c1_i32 = arith.constant 1 : i32
    %0 = arith.muli %arg0, %c1_i32 : i32
    %1 = arith.addi %0, %arg1 : i32
    %c0_i32 = arith.constant 0 : i32
    %2 = arith.minsi %1, %c0_i32 : i32
    %c0_i32_0 = arith.constant 0 : i32
    %c0_i32_1 = arith.constant 0 : i32
    return %2, %c0_i32_0 : i32, i32
  }
  func.func @transform_1(%arg0: i32, %arg1: i32) -> (i32, i32) {
    %c1_i32 = arith.constant 1 : i32
    %0 = arith.muli %arg0, %c1_i32 : i32
    %1 = arith.addi %0, %arg1 : i32
    %c0_i32 = arith.constant 0 : i32
    %2 = arith.minsi %1, %c0_i32 : i32
    %c0_i32_0 = arith.constant 0 : i32
    %c0_i32_1 = arith.constant 0 : i32
    return %2, %c0_i32_0 : i32, i32
  }
  func.func @transform_2(%arg0: i32, %arg1: i32) -> (i32, i32) {
    %c0_i32 = arith.constant 0 : i32
    %c0_i32_0 = arith.constant 0 : i32
    return %arg0, %c0_i32 : i32, i32
  }
}

</mosaic_0001>

<llo_original>
// kernel: tpu_custom_call.1
$region0: #{tpu_custom_call.1}
  #allocation0 [shape = 'u32[]', space=smem, size = 0x4, offset = 0x4, fixed_abs, tag = 'smem constant byte address 0x4 - core index']
  #allocation1 [shape = 'u32[144,128]{1,0:T(1,128)}', space=vmem, size = 0x12000, scoped, tag = 'internal scratch']
  #allocation2 [shape = 'f32[8,128]{1,0:T(8,128)}', space=vmem, size = 0x1000, scoped, tag = 'scratch operand']
  %s0 = inlined_call_operand.hbm [shape: f32[16,128], index: 0, kind: input, shape index: {}]
  %s1 = inlined_call_operand.hbm [shape: f32[16,128], index: 1, kind: input, shape index: {}]
  %s2 = inlined_call_operand.hbm [shape: f32[8,128], index: 2, kind: output, shape index: {}]
  %s3 = sld [smem:[#allocation0]]
  $region42: #{tpu_custom_call.1} parent=0
    _
  %s5 = ssub.s32 1, %s3
  %s6 = scalar_select 0, %s5, %s3
  $region1: #{tpu_custom_call.1} parent=0
    #allocation3 [shape = 'u8[8192]{0}', space=vmem, size = 0x2000, scoped, tag = 'input window, operand 0, single buffered']
    #allocation4 [shape = 's32[1]{0}', space=sflag, size = 0x4, scoped, tag = 'scoped memory for tpu_custom_call.1']
    #allocation5 [shape = 's32[1]{0}', space=sflag, size = 0x4, scoped, tag = 'scoped memory for tpu_custom_call.1']
    #allocation6 [shape = 'u8[8192]{0}', space=vmem, size = 0x2000, scoped, tag = 'input window, operand 1, single buffered']
    #allocation7 [shape = 's32[1]{0}', space=sflag, size = 0x4, scoped, tag = 'scoped memory for tpu_custom_call.1']
    #allocation8 [shape = 'u8[4096]{0}', space=vmem, size = 0x1000, scoped, tag = 'output window, operand 0, single buffered']
    %7 = vsyncpa [#allocation4], 0
    %8 = vsyncpa [#allocation7], 0
    %9 = vsyncpa [#allocation5], 0
    // Predicated region
    $region2: #{tpu_custom_call.1} parent=1 // pred_check
      _
    $region3: #{tpu_custom_call.1} parent=1 // pred_check_branch
      %11 = sbr.rel (0) target = $region5
    $region4: #{tpu_custom_call.1} parent=1 // pred_region
      %s12 = sadd.s32 0, 0
      %p13 = scmp.lt.s32.totalorder %s12, 0
      %s14 = scalar_select %p13, %s12, 0
      %s15 = smul.u32 2, %s14
      %s17 = ssub.s32 256, 256
      %18 = vsyncadd [#allocation4], %s17
      %s19 = smul.addr %s15, 128
      %s20 = scalar_lea.hbm %s0, %s19
      %s21 = sshll.u32 [#allocation3], 4
      %s22 = int_to_ptr.vmem [resolvable:$true] %s21
      %27 = dma.hbm_to_vmem [thread:$0]  %s20, 256, %s22, [#allocation4], 128, 128, 8
    $region5: #{tpu_custom_call.1} parent=1 // pred_fallthru
      _
    // Predicated region
    $region6: #{tpu_custom_call.1} parent=1 // pred_check
      _
    $region7: #{tpu_custom_call.1} parent=1 // pred_check_branch
      %29 = sbr.rel (0) target = $region9
    $region8: #{tpu_custom_call.1} parent=1 // pred_region
      %s30 = sadd.s32 0, 0
      %p31 = scmp.lt.s32.totalorder %s30, 0
      %s32 = scalar_select %p31, %s30, 0
      %s33 = smul.u32 2, %s32
      %s35 = ssub.s32 256, 256
      %36 = vsyncadd [#allocation7], %s35
      %s37 = smul.addr %s33, 128
      %s38 = scalar_lea.hbm %s1, %s37
      %s39 = sshll.u32 [#allocation6], 4
      %s40 = int_to_ptr.vmem [resolvable:$true] %s39
      %45 = dma.hbm_to_vmem [thread:$0]  %s38, 256, %s40, [#allocation7], 128, 128, 8
    $region9: #{tpu_custom_call.1} parent=1 // pred_fallthru
      _
    // Predicated region
    $region10: #{tpu_custom_call.1} parent=1 // pred_check
      _
    $region11: #{tpu_custom_call.1} parent=1 // pred_check_branch
      %47 = sbr.rel (0) target = $region13
    $region12: #{tpu_custom_call.1} parent=1 // pred_region
      %48 = dma.done [#allocation4], 256
    $region13: #{tpu_custom_call.1} parent=1 // pred_fallthru
      _
    // Predicated region
    $region14: #{tpu_custom_call.1} parent=1 // pred_check
      _
    $region15: #{tpu_custom_call.1} parent=1 // pred_check_branch
      %50 = sbr.rel (0) target = $region17
    $region16: #{tpu_custom_call.1} parent=1 // pred_region
      %51 = dma.done [#allocation7], 256
    $region17: #{tpu_custom_call.1} parent=1 // pred_fallthru
      _
    %s52 = sadd.s32 0, 0
    %p53 = scmp.lt.s32.totalorder %s52, 0
    %s54 = scalar_select %p53, %s52, 0
    %s55 = smul.u32 2, %s54
    %s56 = sadd.s32 0, 0
    %p57 = scmp.lt.s32.totalorder %s56, 0
    %s58 = scalar_select %p57, %s56, 0
    %s59 = smul.u32 2, %s58
    %p60 = scmp.eq.s32.totalorder 0, 0
    // Predicated region
    $region18: #{tpu_custom_call.1} parent=1 // pred_check
      %p61 = pneg %p60
    $region19: #{tpu_custom_call.1} parent=1 // pred_check_branch
      %63 = sbr.rel (%p61) target = $region21
    $region20: #{tpu_custom_call.1} parent=1 // pred_region
      %64 = vst [vmem:[#allocation2] sm:$0xff] 0.0
    $region21: #{tpu_custom_call.1} parent=1 // pred_fallthru
      _
    %v65 = vld [vmem:[#allocation3] sm:$0xff]
    %v66 = vld [vmem:[#allocation3 + $0x8] sm:$0xff]
    %v67 = vld [vmem:[#allocation6] sm:$0xff]
    %v68 = vld [vmem:[#allocation6 + $0x8] sm:$0xff]
    %v69 = vsub.f32 %v65, %v67
    %v70 = vsub.f32 %v66, %v68
    %s71 = sadd.s32 0, 0
    %s72 = smul.u32 %s71, 16
    %s73 = sadd.s32 %s72, 16
    %p74 = scmp.gt.s32.totalorder %s73, 16
    // Predicated region
    $region22: #{tpu_custom_call.1} parent=1 // pred_check
      %p75 = pneg %p74
    $region23: #{tpu_custom_call.1} parent=1 // pred_check_branch
      %77 = sbr.rel (%p75) target = $region25
    $region24: #{tpu_custom_call.1} parent=1 // pred_region
      %v78 = vlaneseq
      %v79 = vshrl.u32 %v78, 7
      %v80 = vadd.s32 %v79, 8
      %v81 = vstv %s72
      %v82 = vadd.s32 %v81, %v79
      %v83 = vadd.s32 %v81, %v80
      %vm84 = vcmp.lt.s32.totalorder %v82, 16
      %vm85 = vcmp.lt.s32.totalorder %v83, 16
      %v86 = vsel %vm84, %v69, 0.0
      %v87 = vsel %vm85, %v70, 0.0
      %v88 = vld [vmem:[#allocation2] sm:$0xff]
      %v89 = vmul.f32 %v86, %v86
      %v90 = vmul.f32 %v87, %v87
      %v91 = vadd.f32 %v89, %v90
      %v92 = vadd.f32 %v88, %v91
      %93 = vst [vmem:[#allocation2] sm:$0xff] %v92
    $region25: #{tpu_custom_call.1} parent=1 // pred_fallthru
      _
    %p94 = scmp.le.s32.totalorder %s73, 16
    // Predicated region
    $region26: #{tpu_custom_call.1} parent=1 // pred_check
      %p95 = pneg %p94
    $region27: #{tpu_custom_call.1} parent=1 // pred_check_branch
      %97 = sbr.rel (%p95) target = $region29
    $region28: #{tpu_custom_call.1} parent=1 // pred_region
      %v98 = vld [vmem:[#allocation2] sm:$0xff]
      %v99 = vmul.f32 %v69, %v69
      %v100 = vmul.f32 %v70, %v70
      %v101 = vadd.f32 %v99, %v100
      %v102 = vadd.f32 %v98, %v101
      %103 = vst [vmem:[#allocation2] sm:$0xff] %v102
    $region29: #{tpu_custom_call.1} parent=1 // pred_fallthru
      _
    // Predicated region
    $region30: #{tpu_custom_call.1} parent=1 // pred_check
      %p104 = pneg %p60
    $region31: #{tpu_custom_call.1} parent=1 // pred_check_branch
      %106 = sbr.rel (%p104) target = $region33
    $region32: #{tpu_custom_call.1} parent=1 // pred_region
      %v107 = vld [vmem:[#allocation2] sm:$0xff]
      %108 = vst [vmem:[#allocation8] sm:$0xff] %v107
    $region33: #{tpu_custom_call.1} parent=1 // pred_fallthru
      _
    // Predicated region
    $region34: #{tpu_custom_call.1} parent=1 // pred_check
      _
    $region35: #{tpu_custom_call.1} parent=1 // pred_check_branch
      %110 = sbr.rel (0) target = $region37
    $region36: #{tpu_custom_call.1} parent=1 // pred_region
      %s112 = ssub.s32 128, 128
      %113 = vsyncadd [#allocation5], %s112
      %s115 = sshll.u32 [#allocation8], 4
      %s116 = int_to_ptr.vmem [resolvable:$true] %s115
      %118 = dma.vmem_to_hbm [thread:$0]  %s116, 128, %s2, [#allocation5]
    $region37: #{tpu_custom_call.1} parent=1 // pred_fallthru
      _
    // Predicated region
    $region38: #{tpu_custom_call.1} parent=1 // pred_check
      _
    $region39: #{tpu_custom_call.1} parent=1 // pred_check_branch
      %120 = sbr.rel (0) target = $region41
    $region40: #{tpu_custom_call.1} parent=1 // pred_region
      %121 = dma.done [#allocation5], 128
    $region41: #{tpu_custom_call.1} parent=1 // pred_fallthru
      _
    %122 = vsyncpa [#allocation4], 1
    %123 = vsyncpa [#allocation7], 1
    %124 = vsyncpa [#allocation5], 1

</llo_original>
